<compile_context>
chip_gen: v7x
topology: tpu7x:2x2x1
jax: 0.10.0
libtpu: 0.0.40
codegen_flags: <defaults>
</compile_context>

<pallas_src>
import functools

import jax
import jax.numpy as jnp
from jax.experimental import pallas as pl
from jax.experimental.pallas import tpu as pltpu


_TILE_ELEM_BUDGET = 1 << 20     # C * t_hw f32 elements  (~24 MiB of tile buffers)
_RESIDENT_X_BYTES = 16 << 20    # keep x resident in VMEM up to this many bytes


# ----------------------------------------------------------------------------
# Fused kernel.  Grid = (2, N, nt): axis 0 = pass (0 stats, 1 apply),
# axis 1 = batch image, axis 2 = spatial row tile.
# ----------------------------------------------------------------------------
def cell_kernel(x_ref, w_ref, gamma_ref, beta_ref, o_ref,
                sum_ref, sumsq_ref, scale_ref, shift_ref, *rest,
                inv_m, eps, use_residual, resident_x, tiles_per_image):
    p = pl.program_id(0)                       # pass index
    b = pl.program_id(1)                       # image index
    i = pl.program_id(2)                       # spatial tile index
    first_tile = jnp.logical_and(b == 0, i == 0)
    xres_ref = rest[0] if resident_x else None

    @pl.when(jnp.logical_and(p == 0, first_tile))
    def _init_stats():
        sum_ref[...] = jnp.zeros_like(sum_ref)
        sumsq_ref[...] = jnp.zeros_like(sumsq_ref)

    @pl.when(p == 0)
    def _stats_pass():
        x = x_ref[0]                                           # (C, t_hw) f32
        if resident_x:
            xres_ref[b * tiles_per_image + i] = x              # keep x in VMEM
        # y^T = W_eff^T @ x^T : bf16 MXU matmul, f32 accumulation.
        y = jnp.dot(w_ref[...], x.astype(jnp.bfloat16),
                    preferred_element_type=jnp.float32)
        # Lane-parallel partial sums: plain VPU adds, no per-tile reduce.
        sum_ref[...] += y
        sumsq_ref[...] += y * y

    @pl.when(jnp.logical_and(p == 1, first_tile))
    def _finalize_stats():
        # Single cross-lane reduce + BN scale/shift derivation, done ONCE.
        mean = jnp.sum(sum_ref[...], axis=1, keepdims=True) * inv_m      # (C,1)
        ex2 = jnp.sum(sumsq_ref[...], axis=1, keepdims=True) * inv_m
        var = jnp.maximum(ex2 - mean * mean, 0.0)                        # biased
        inv_std = jax.lax.rsqrt(var + eps)
        scale = gamma_ref[...] * inv_std
        scale_ref[...] = scale
        shift_ref[...] = beta_ref[...] - mean * scale

    @pl.when(p == 1)
    def _apply_pass():
        if resident_x:
            x = xres_ref[b * tiles_per_image + i]              # VMEM, no HBM read
        else:
            x = x_ref[0]                                       # re-streamed f32
        y = jnp.dot(w_ref[...], x.astype(jnp.bfloat16),
                    preferred_element_type=jnp.float32)
        out = jnp.maximum(y * scale_ref[...] + shift_ref[...], 0.0)   # BN + ReLU
        if use_residual:
            out = out + x                                      # f32 residual
        o_ref[0] = out.astype(o_ref.dtype)


# ----------------------------------------------------------------------------
# Host-side helpers / wrapper.
# ----------------------------------------------------------------------------
def _fold_weight(params):
    """W_eff (C,C) such that y = x2d @ W_eff (exact for 1x1 branch blocks)."""
    return (params["w10"] @ params["w11"] @ params["ws1"]
            + params["w20"] @ params["w21"] @ params["ws2"]
            + params["w30"] @ params["w31"] @ params["ws3"])


def _pick_spatial_tile(c, hw):
    cap = max(128, ((_TILE_ELEM_BUDGET // c) // 128) * 128)
    if hw % 128 != 0:
        # Full-extent spatial block (exempt from the (8,128) divisibility rule).
        return hw
    if hw <= cap:
        return hw
    t = cap
    while hw % t != 0:
        t -= 128
    return t


def cell_forward(x_nchw, params, *, use_residual=True, eps=1e-5,
                 t_hw=None, resident_x=None):
    n, c, h, w = x_nchw.shape
    hw = h * w
    m = n * hw

    if t_hw is None:
        t_hw = _pick_spatial_tile(c, hw)
    assert hw % t_hw == 0 and (t_hw % 128 == 0 or t_hw == hw), \
        "t_hw must divide H*W and be a multiple of 128 (or the full extent)"
    nt = hw // t_hw

    if resident_x is None:
        resident_x = (n * c * hw * 4) <= _RESIDENT_X_BYTES

    # NCHW -> (N, C, H*W): free contiguous reshape, no transpose, no cast pass.
    x3d = x_nchw.reshape(n, c, hw).astype(jnp.float32)

    # Fold branches + shrink; kernel uses W_eff^T since data is (C, H*W).
    w_eff_t = _fold_weight(params).T.astype(jnp.bfloat16)        # (C, C), tiny
    gamma = params["gamma"].reshape(c, 1).astype(jnp.float32)
    beta = params["beta"].reshape(c, 1).astype(jnp.float32)

    kernel = functools.partial(
        cell_kernel, inv_m=1.0 / m, eps=eps, use_residual=use_residual,
        resident_x=resident_x, tiles_per_image=nt)

    if resident_x:
        # Pass 0 streams every tile; pass 1 pins x at block (0,0,0) (no re-DMA).
        x_index_map = lambda p, b, i: (b * (1 - p), 0, i * (1 - p))
    else:
        x_index_map = lambda p, b, i: (b, 0, i)

    scratch = [
        pltpu.VMEM((c, t_hw), jnp.float32),   # lane-parallel per-channel sum
        pltpu.VMEM((c, t_hw), jnp.float32),   # lane-parallel per-channel sum(y^2)
        pltpu.VMEM((c, 1), jnp.float32),      # BN scale  = gamma * inv_std
        pltpu.VMEM((c, 1), jnp.float32),      # BN shift  = beta - mean * scale
    ]
    if resident_x:
        scratch.append(pltpu.VMEM((n * nt, c, t_hw), jnp.float32))

    tile_bytes = c * t_hw * 4
    vmem_needed = (6 * tile_bytes
                   + (n * nt * c * t_hw * 4 if resident_x else 0)
                   + (2 << 20))
    vmem_limit = int(min(max(vmem_needed, 32 << 20), 48 << 20))  # v7x-safe

    out3d = pl.pallas_call(
        kernel,
        out_shape=jax.ShapeDtypeStruct((n, c, hw), jnp.float32),
        grid_spec=pltpu.PrefetchScalarGridSpec(
            num_scalar_prefetch=0,
            grid=(2, n, nt),
            in_specs=[
                pl.BlockSpec((1, c, t_hw), x_index_map),            # x tile
                pl.BlockSpec((c, c), lambda p, b, i: (0, 0)),       # W_eff^T
                pl.BlockSpec((c, 1), lambda p, b, i: (0, 0)),       # gamma
                pl.BlockSpec((c, 1), lambda p, b, i: (0, 0)),       # beta
            ],
            # Pinned at block (0,0,0) through pass 0 (block index never changes
            # -> never flushed), then walked & fully written during pass 1.
            out_specs=pl.BlockSpec((1, c, t_hw), lambda p, b, i: (b * p, 0, i * p)),
            scratch_shapes=scratch),
        compiler_params=pltpu.CompilerParams(
            # Resident stats + pass-1 dependency on pass-0 => all axes serial.
            dimension_semantics=("arbitrary", "arbitrary", "arbitrary"),
            vmem_limit_bytes=vmem_limit),
    )(x3d, w_eff_t, gamma, beta)

    # (N, C, H*W) -> NCHW: free reshape.
    return out3d.reshape(n, c, h, w)


# ----------------------------------------------------------------------------
# Pure-JAX references.
# ----------------------------------------------------------------------------
def reference_forward(x_nchw, params, *, use_residual=True, eps=1e-5):
    """Full-f32 reference mirroring the PyTorch forward (training-mode BN)."""
    n, c, h, w = x_nchw.shape
    x2d = jnp.transpose(x_nchw, (0, 2, 3, 1)).reshape(-1, c).astype(jnp.float32)
    s1 = x2d @ params["w10"] @ params["w11"]
    s2 = x2d @ params["w20"] @ params["w21"]
    s3 = x2d @ params["w30"] @ params["w31"]
    y = s1 @ params["ws1"] + s2 @ params["ws2"] + s3 @ params["ws3"]
    mean = y.mean(axis=0)
    var = y.var(axis=0)          # biased, as BN uses for normalization
    yhat = (y - mean) / jnp.sqrt(var + eps)
    out = jnp.maximum(yhat * params["gamma"] + params["beta"], 0.0)
    if use_residual:
        out = out + x2d
    return jnp.transpose(out.reshape(n, h, w, c), (0, 3, 1, 2))


def reference_forward_kernel_numerics(x_nchw, params, *, use_residual=True, eps=1e-5):
    """Same math, but matmul inputs rounded to bf16 (as the kernel's MXU dot);
    the residual uses un-rounded f32 x, matching the kernel's f32 streaming."""
    n, c, h, w = x_nchw.shape
    x2d = jnp.transpose(x_nchw, (0, 2, 3, 1)).reshape(-1, c).astype(jnp.float32)
    a = _fold_weight(params).astype(jnp.bfloat16).astype(jnp.float32)
    xb = x2d.astype(jnp.bfloat16).astype(jnp.float32)
    y = xb @ a
    mean = y.mean(axis=0)
    var = y.var(axis=0)
    yhat = (y - mean) / jnp.sqrt(var + eps)
    out = jnp.maximum(yhat * params["gamma"] + params["beta"], 0.0)
    if use_residual:
        out = out + x2d
    return jnp.transpose(out.reshape(n, h, w, c), (0, 3, 1, 2))


def make_params(key, in_channels, mids, outs):
    """Deterministic synthetic parameters. Weights stored as (C_in, C_out)."""
    ks = jax.random.split(key, 9)
    c1, c2, c3 = outs
    m1, m2, m3 = mids

    def rnd(k, shape, scale=0.2):
        return (scale * jax.random.normal(k, shape)).astype(jnp.float32)

    w_shrink = rnd(ks[6], (c1 + c2 + c3, in_channels))
    return {
        "w10": rnd(ks[0], (in_channels, m1)),
        "w11": rnd(ks[1], (m1, c1)),
        "w20": rnd(ks[2], (in_channels, m2)),
        "w21": rnd(ks[3], (m2, c2)),
        "w30": rnd(ks[4], (in_channels, m3)),
        "w31": rnd(ks[5], (m3, c3)),
        "ws1": w_shrink[:c1],
        "ws2": w_shrink[c1:c1 + c2],
        "ws3": w_shrink[c1 + c2:],
        "gamma": (1.0 + 0.1 * jax.random.normal(ks[7], (in_channels,))
                  ).astype(jnp.float32),
        "beta": (0.1 * jax.random.normal(ks[8], (in_channels,))
                 ).astype(jnp.float32),
    }


if __name__ == "__main__":
    key = jax.random.PRNGKey(0)
    k_x, k_p = jax.random.split(key)

    N, C, H, W = 2, 8, 16, 16          # small NCHW input, H*W = 256
    x = jax.random.normal(k_x, (N, C, H, W), dtype=jnp.float32)
    params = make_params(k_p, in_channels=C, mids=(8, 8, 8), outs=(8, 8, 16))

    configs = (
        dict(use_residual=True, t_hw=None, resident_x=None),   # full-tile, resident x
        dict(use_residual=True, t_hw=128, resident_x=False),   # multi-tile, re-streamed x
        dict(use_residual=False, t_hw=None, resident_x=None),  # no-residual path
    )
    for cfg in configs:
        fwd = jax.jit(functools.partial(cell_forward, **cfg))
        out = jax.block_until_ready(fwd(x, params))
        assert out.shape == (N, C, H, W)
        assert bool(jnp.all(jnp.isfinite(out)))

        ref_kernel = reference_forward_kernel_numerics(
            x, params, use_residual=cfg["use_residual"])
        ref_f32 = reference_forward(x, params, use_residual=cfg["use_residual"])
        # Tight check vs a reference with the kernel's bf16-rounded matmul inputs.
        assert jnp.max(jnp.abs(out - ref_kernel)) < 2e-3, "mismatch (bf16-matmul ref)"
        # Loose check vs the exact f32 PyTorch-equivalent forward.
        assert jnp.max(jnp.abs(out - ref_f32)) < 5e-2, "mismatch (exact f32 ref)"

    print("KERNEL_OK")
</pallas_src>

<mosaic_0001>
module attributes {stable_mosaic.version = 11 : i64} {
  func.func @cell_kernel(%arg0: i32, %arg1: i32, %arg2: i32, %arg3: memref<1x8x256xf32, #tpu.memory_space<vmem>>, %arg4: memref<8x8xbf16, #tpu.memory_space<vmem>>, %arg5: memref<8x1xf32, #tpu.memory_space<vmem>>, %arg6: memref<8x1xf32, #tpu.memory_space<vmem>>, %arg7: memref<1x8x256xf32, #tpu.memory_space<vmem>>, %arg8: memref<8x256xf32, #tpu.memory_space<vmem>>, %arg9: memref<8x256xf32, #tpu.memory_space<vmem>>, %arg10: memref<8x1xf32, #tpu.memory_space<vmem>>, %arg11: memref<8x1xf32, #tpu.memory_space<vmem>>, %arg12: memref<2x8x256xf32, #tpu.memory_space<vmem>>) attributes {dimension_semantics = [#tpu.dimension_semantics<arbitrary>, #tpu.dimension_semantics<arbitrary>, #tpu.dimension_semantics<arbitrary>], iteration_bounds = array<i64: 2, 2, 1>, scalar_prefetch = 0 : i64, scratch_operands = 5 : i64, tpu.core_type = #tpu.core_type<tc>, window_params = [{transform_indices = @transform_0, window_bounds = array<i64: 1, 8, 256>}, {pipeline_mode = #tpu.pipeline_mode<synchronous>, transform_indices = @transform_1, window_bounds = array<i64: 8, 8>}, {pipeline_mode = #tpu.pipeline_mode<synchronous>, transform_indices = @transform_2, window_bounds = array<i64: 8, 1>}, {pipeline_mode = #tpu.pipeline_mode<synchronous>, transform_indices = @transform_3, window_bounds = array<i64: 8, 1>}, {transform_indices = @transform_4, window_bounds = array<i64: 1, 8, 256>}]} {
    %c0_i32 = arith.constant 0 : i32
    %0 = arith.cmpi eq, %arg1, %c0_i32 : i32
    %c0_i32_0 = arith.constant 0 : i32
    %1 = arith.cmpi eq, %arg2, %c0_i32_0 : i32
    %2 = arith.andi %0, %1 : i1
    %c0_i32_1 = arith.constant 0 : i32
    %3 = arith.cmpi eq, %arg0, %c0_i32_1 : i32
    %4 = arith.andi %3, %2 : i1
    %5 = arith.extui %4 : i1 to i32
    %c0_i32_2 = arith.constant 0 : i32
    %6 = arith.cmpi ne, %5, %c0_i32_2 : i32
    scf.if %6 {
      %cst = arith.constant 0.000000e+00 : f32
      %17 = vector.broadcast %cst : f32 to vector<8x256xf32>
      %c0 = arith.constant 0 : index
      %c0_8 = arith.constant 0 : index
      %18 = vector.load %arg8[%c0, %c0_8] : memref<8x256xf32, #tpu.memory_space<vmem>>, vector<8x256xf32>
      tpu.vector_store %arg8[%c0, %c0_8], %17 {strides = array<i32>} : memref<8x256xf32, #tpu.memory_space<vmem>>, vector<8x256xf32>,
      %cst_9 = arith.constant 0.000000e+00 : f32
      %19 = vector.broadcast %cst_9 : f32 to vector<8x256xf32>
      %c0_10 = arith.constant 0 : index
      %c0_11 = arith.constant 0 : index
      %20 = vector.load %arg9[%c0_10, %c0_11] : memref<8x256xf32, #tpu.memory_space<vmem>>, vector<8x256xf32>
      tpu.vector_store %arg9[%c0_10, %c0_11], %19 {strides = array<i32>} : memref<8x256xf32, #tpu.memory_space<vmem>>, vector<8x256xf32>,
    } else {
    }
    %c0_i32_3 = arith.constant 0 : i32
    %7 = arith.cmpi eq, %arg0, %c0_i32_3 : i32
    %8 = arith.extui %7 : i1 to i32
    %c0_i32_4 = arith.constant 0 : i32
    %9 = arith.cmpi ne, %8, %c0_i32_4 : i32
    scf.if %9 {
      %c0 = arith.constant 0 : index
      %c0_8 = arith.constant 0 : index
      %c0_9 = arith.constant 0 : index
      %17 = vector.load %arg3[%c0, %c0_8, %c0_9] : memref<1x8x256xf32, #tpu.memory_space<vmem>>, vector<1x8x256xf32>
      %18 = vector.shape_cast %17 : vector<1x8x256xf32> to vector<8x256xf32>
      %c1_i32_10 = arith.constant 1 : i32
      %19 = arith.muli %arg1, %c1_i32_10 : i32
      %20 = arith.addi %19, %arg2 : i32
      %21 = arith.index_cast %20 : i32 to index
      %c0_11 = arith.constant 0 : index
      %c0_12 = arith.constant 0 : index
      %22 = vector.load %arg12[%21, %c0_11, %c0_12] : memref<2x8x256xf32, #tpu.memory_space<vmem>>, vector<1x8x256xf32>
      %23 = vector.shape_cast %22 : vector<1x8x256xf32> to vector<8x256xf32>
      %24 = vector.shape_cast %18 : vector<8x256xf32> to vector<1x8x256xf32>
      tpu.vector_store %arg12[%21, %c0_11, %c0_12], %24 {strides = array<i32>} : memref<2x8x256xf32, #tpu.memory_space<vmem>>, vector<1x8x256xf32>,
      %c0_13 = arith.constant 0 : index
      %c0_14 = arith.constant 0 : index
      %25 = vector.load %arg4[%c0_13, %c0_14] : memref<8x8xbf16, #tpu.memory_space<vmem>>, vector<8x8xbf16>
      %26 = arith.truncf %18 : vector<8x256xf32> to vector<8x256xbf16>
      %cst = arith.constant dense<0.000000e+00> : vector<8x256xf32>
      %27 = tpu.matmul %25, %26, %cst {dimension_numbers = #tpu.dot_dimension_numbers<[1], [0], [0], [1], [0, 0, 1, 1], [], []>} : vector<8x8xbf16>, vector<8x256xbf16>, vector<8x256xf32> -> vector<8x256xf32>
      %c0_15 = arith.constant 0 : index
      %c0_16 = arith.constant 0 : index
      %28 = vector.load %arg8[%c0_15, %c0_16] : memref<8x256xf32, #tpu.memory_space<vmem>>, vector<8x256xf32>
      %29 = arith.addf %28, %27 : vector<8x256xf32>
      %c0_17 = arith.constant 0 : index
      %c0_18 = arith.constant 0 : index
      %30 = vector.load %arg8[%c0_17, %c0_18] : memref<8x256xf32, #tpu.memory_space<vmem>>, vector<8x256xf32>
      tpu.vector_store %arg8[%c0_17, %c0_18], %29 {strides = array<i32>} : memref<8x256xf32, #tpu.memory_space<vmem>>, vector<8x256xf32>,
      %c0_19 = arith.constant 0 : index
      %c0_20 = arith.constant 0 : index
      %31 = vector.load %arg9[%c0_19, %c0_20] : memref<8x256xf32, #tpu.memory_space<vmem>>, vector<8x256xf32>
      %32 = arith.mulf %27, %27 : vector<8x256xf32>
      %33 = arith.addf %31, %32 : vector<8x256xf32>
      %c0_21 = arith.constant 0 : index
      %c0_22 = arith.constant 0 : index
      %34 = vector.load %arg9[%c0_21, %c0_22] : memref<8x256xf32, #tpu.memory_space<vmem>>, vector<8x256xf32>
      tpu.vector_store %arg9[%c0_21, %c0_22], %33 {strides = array<i32>} : memref<8x256xf32, #tpu.memory_space<vmem>>, vector<8x256xf32>,
    } else {
    }
    %c1_i32 = arith.constant 1 : i32
    %10 = arith.cmpi eq, %arg0, %c1_i32 : i32
    %11 = arith.andi %10, %2 : i1
    %12 = arith.extui %11 : i1 to i32
    %c0_i32_5 = arith.constant 0 : i32
    %13 = arith.cmpi ne, %12, %c0_i32_5 : i32
    scf.if %13 {
      %c0 = arith.constant 0 : index
      %c0_8 = arith.constant 0 : index
      %17 = vector.load %arg8[%c0, %c0_8] : memref<8x256xf32, #tpu.memory_space<vmem>>, vector<8x256xf32>
      %cst = arith.constant dense<0.000000e+00> : vector<8xf32>
      %18 = vector.multi_reduction <add>, %17, %cst [1] : vector<8x256xf32> to vector<8xf32>
      %19 = vector.shape_cast %18 : vector<8xf32> to vector<8x1xf32>
      %cst_9 = arith.constant 0.001953125 : f32
      %20 = vector.broadcast %cst_9 : f32 to vector<8x1xf32>
      %21 = arith.mulf %19, %20 : vector<8x1xf32>
      %c0_10 = arith.constant 0 : index
      %c0_11 = arith.constant 0 : index
      %22 = vector.load %arg9[%c0_10, %c0_11] : memref<8x256xf32, #tpu.memory_space<vmem>>, vector<8x256xf32>
      %cst_12 = arith.constant dense<0.000000e+00> : vector<8xf32>
      %23 = vector.multi_reduction <add>, %22, %cst_12 [1] : vector<8x256xf32> to vector<8xf32>
      %24 = vector.shape_cast %23 : vector<8xf32> to vector<8x1xf32>
      %cst_13 = arith.constant 0.001953125 : f32
      %25 = vector.broadcast %cst_13 : f32 to vector<8x1xf32>
      %26 = arith.mulf %24, %25 : vector<8x1xf32>
      %27 = arith.mulf %21, %21 : vector<8x1xf32>
      %28 = arith.subf %26, %27 : vector<8x1xf32>
      %cst_14 = arith.constant 0.000000e+00 : f32
      %29 = vector.broadcast %cst_14 : f32 to vector<8x1xf32>
      %30 = arith.maximumf %28, %29 : vector<8x1xf32>
      %cst_15 = arith.constant 9.99999974E-6 : f32
      %31 = vector.broadcast %cst_15 : f32 to vector<8x1xf32>
      %32 = arith.addf %30, %31 : vector<8x1xf32>
      %33 = math.rsqrt %32 : vector<8x1xf32>
      %c0_16 = arith.constant 0 : index
      %c0_17 = arith.constant 0 : index
      %34 = vector.load %arg5[%c0_16, %c0_17] : memref<8x1xf32, #tpu.memory_space<vmem>>, vector<8x1xf32>
      %35 = arith.mulf %34, %33 : vector<8x1xf32>
      %c0_18 = arith.constant 0 : index
      %c0_19 = arith.constant 0 : index
      %36 = vector.load %arg10[%c0_18, %c0_19] : memref<8x1xf32, #tpu.memory_space<vmem>>, vector<8x1xf32>
      tpu.vector_store %arg10[%c0_18, %c0_19], %35 {strides = array<i32>} : memref<8x1xf32, #tpu.memory_space<vmem>>, vector<8x1xf32>,
      %c0_20 = arith.constant 0 : index
      %c0_21 = arith.constant 0 : index
      %37 = vector.load %arg6[%c0_20, %c0_21] : memref<8x1xf32, #tpu.memory_space<vmem>>, vector<8x1xf32>
      %38 = arith.mulf %21, %35 : vector<8x1xf32>
      %39 = arith.subf %37, %38 : vector<8x1xf32>
      %c0_22 = arith.constant 0 : index
      %c0_23 = arith.constant 0 : index
      %40 = vector.load %arg11[%c0_22, %c0_23] : memref<8x1xf32, #tpu.memory_space<vmem>>, vector<8x1xf32>
      tpu.vector_store %arg11[%c0_22, %c0_23], %39 {strides = array<i32>} : memref<8x1xf32, #tpu.memory_space<vmem>>, vector<8x1xf32>,
    } else {
    }
    %c1_i32_6 = arith.constant 1 : i32
    %14 = arith.cmpi eq, %arg0, %c1_i32_6 : i32
    %15 = arith.extui %14 : i1 to i32
    %c0_i32_7 = arith.constant 0 : i32
    %16 = arith.cmpi ne, %15, %c0_i32_7 : i32
    scf.if %16 {
      %c1_i32_8 = arith.constant 1 : i32
      %17 = arith.muli %arg1, %c1_i32_8 : i32
      %18 = arith.addi %17, %arg2 : i32
      %19 = arith.index_cast %18 : i32 to index
      %c0 = arith.constant 0 : index
      %c0_9 = arith.constant 0 : index
      %20 = vector.load %arg12[%19, %c0, %c0_9] : memref<2x8x256xf32, #tpu.memory_space<vmem>>, vector<1x8x256xf32>
      %21 = vector.shape_cast %20 : vector<1x8x256xf32> to vector<8x256xf32>
      %c0_10 = arith.constant 0 : index
      %c0_11 = arith.constant 0 : index
      %22 = vector.load %arg4[%c0_10, %c0_11] : memref<8x8xbf16, #tpu.memory_space<vmem>>, vector<8x8xbf16>
      %23 = arith.truncf %21 : vector<8x256xf32> to vector<8x256xbf16>
      %cst = arith.constant dense<0.000000e+00> : vector<8x256xf32>
      %24 = tpu.matmul %22, %23, %cst {dimension_numbers = #tpu.dot_dimension_numbers<[1], [0], [0], [1], [0, 0, 1, 1], [], []>} : vector<8x8xbf16>, vector<8x256xbf16>, vector<8x256xf32> -> vector<8x256xf32>
      %c0_12 = arith.constant 0 : index
      %c0_13 = arith.constant 0 : index
      %25 = vector.load %arg10[%c0_12, %c0_13] : memref<8x1xf32, #tpu.memory_space<vmem>>, vector<8x1xf32>
      %26 = vector.broadcast %25 : vector<8x1xf32> to vector<8x256xf32>
      %27 = arith.mulf %24, %26 : vector<8x256xf32>
      %c0_14 = arith.constant 0 : index
      %c0_15 = arith.constant 0 : index
      %28 = vector.load %arg11[%c0_14, %c0_15] : memref<8x1xf32, #tpu.memory_space<vmem>>, vector<8x1xf32>
      %29 = vector.broadcast %28 : vector<8x1xf32> to vector<8x256xf32>
      %30 = arith.addf %27, %29 : vector<8x256xf32>
      %cst_16 = arith.constant 0.000000e+00 : f32
      %31 = vector.broadcast %cst_16 : f32 to vector<8x256xf32>
      %32 = arith.maximumf %30, %31 : vector<8x256xf32>
      %33 = arith.addf %32, %21 : vector<8x256xf32>
      %c0_17 = arith.constant 0 : index
      %c0_18 = arith.constant 0 : index
      %c0_19 = arith.constant 0 : index
      %34 = vector.load %arg7[%c0_17, %c0_18, %c0_19] : memref<1x8x256xf32, #tpu.memory_space<vmem>>, vector<1x8x256xf32>
      %35 = vector.shape_cast %34 : vector<1x8x256xf32> to vector<8x256xf32>
      %36 = vector.shape_cast %33 : vector<8x256xf32> to vector<1x8x256xf32>
      tpu.vector_store %arg7[%c0_17, %c0_18, %c0_19], %36 {strides = array<i32>} : memref<1x8x256xf32, #tpu.memory_space<vmem>>, vector<1x8x256xf32>,
    } else {
    }
    return
  }
  func.func @transform_0(%arg0: i32, %arg1: i32, %arg2: i32) -> (i32, i32, i32) {
    %c1_i32 = arith.constant 1 : i32
    %0 = arith.subi %c1_i32, %arg0 : i32
    %1 = arith.muli %arg1, %0 : i32
    %c1_i32_0 = arith.constant 1 : i32
    %2 = arith.subi %c1_i32_0, %arg0 : i32
    %3 = arith.muli %arg2, %2 : i32
    %c0_i32 = arith.constant 0 : i32
    %c0_i32_1 = arith.constant 0 : i32
    return %1, %c0_i32, %3 : i32, i32, i32
  }
  func.func @transform_1(%arg0: i32, %arg1: i32, %arg2: i32) -> (i32, i32) {
    %c0_i32 = arith.constant 0 : i32
    %c0_i32_0 = arith.constant 0 : i32
    %c0_i32_1 = arith.constant 0 : i32
    return %c0_i32, %c0_i32_0 : i32, i32
  }
  func.func @transform_2(%arg0: i32, %arg1: i32, %arg2: i32) -> (i32, i32) {
    %c0_i32 = arith.constant 0 : i32
    %c0_i32_0 = arith.constant 0 : i32
    %c0_i32_1 = arith.constant 0 : i32
    return %c0_i32, %c0_i32_0 : i32, i32
  }
  func.func @transform_3(%arg0: i32, %arg1: i32, %arg2: i32) -> (i32, i32) {
    %c0_i32 = arith.constant 0 : i32
    %c0_i32_0 = arith.constant 0 : i32
    %c0_i32_1 = arith.constant 0 : i32
    return %c0_i32, %c0_i32_0 : i32, i32
  }
  func.func @transform_4(%arg0: i32, %arg1: i32, %arg2: i32) -> (i32, i32, i32) {
    %0 = arith.muli %arg1, %arg0 : i32
    %1 = arith.muli %arg2, %arg0 : i32
    %c0_i32 = arith.constant 0 : i32
    %c0_i32_0 = arith.constant 0 : i32
    return %0, %c0_i32, %1 : i32, i32, i32
  }
}

</mosaic_0001>

<llo_original>
// kernel: cell_forward.1
$region0: #{cell_forward.1}
  #allocation0 [shape = 'u32[]', space=smem, size = 0x4, offset = 0x4, fixed_abs, tag = 'smem constant byte address 0x4 - core index']
  #allocation1 [shape = 'u32[144,128]{1,0:T(1,128)}', space=vmem, size = 0x12000, scoped, tag = 'internal scratch']
  #allocation2 [shape = 'f32[8,256]{1,0:T(8,128)}', space=vmem, size = 0x2000, scoped, tag = 'scratch operand']
  #allocation3 [shape = 'f32[8,256]{1,0:T(8,128)}', space=vmem, size = 0x2000, scoped, tag = 'scratch operand']
  #allocation4 [shape = 'f32[8,1]{1,0:T(8,128)}', space=vmem, size = 0x1000, scoped, tag = 'scratch operand']
  #allocation5 [shape = 'f32[8,1]{1,0:T(8,128)}', space=vmem, size = 0x1000, scoped, tag = 'scratch operand']
  #allocation6 [shape = 'f32[2,8,256]{2,1,0:T(8,128)}', space=vmem, size = 0x4000, scoped, tag = 'scratch operand']
  %s0 = inlined_call_operand.vmem [shape: f32[2,8,256], index: 0, kind: input, shape index: {}]
  %s1 = inlined_call_operand.vmem [shape: bf16[8,8], index: 1, kind: input, shape index: {}]
  %s2 = inlined_call_operand.vmem [shape: f32[8,1], index: 2, kind: input, shape index: {}]
  %s3 = inlined_call_operand.vmem [shape: f32[8,1], index: 3, kind: input, shape index: {}]
  %s4 = inlined_call_operand.vmem [shape: f32[2,8,256], index: 4, kind: output, shape index: {}]
  %s5 = sld [smem:[#allocation0]]
  $region65: #{cell_forward.1} parent=0
    _
  %s7 = ssub.s32 1, %s5
  %s8 = scalar_select 0, %s7, %s5
  loop: start=0, step=1, limit=6
  $region2: #{cell_forward.1} parent=0 // loop_pre_header
    _
  $region3: #{cell_forward.1} parent=0 // loop_header
    %s10 = sphi 0, %s14
    %p11 = scmp.ge.s32.totalorder %s10, 6
    %s17 = sphi 0, %s36
    %s18 = sphi 0, %s32
    %s19 = sphi 0, %s28
    %s20 = sphi 0, %s17
    %s21 = sphi 0, %s18
    %s22 = sphi 0, %s19
    %s23 = sphi 0, %s20
    %s24 = sphi 0, %s21
    %s25 = sphi 0, %s22
    %s47 = sphi 0, %s49
    %s50 = sphi 0, %s47
    %s51 = sphi 0, %s50
    %s67 = sphi 0, %s51
    %s71 = sphi 0, %s71
    %s73 = sphi 0, %s71
    %s74 = sphi 0, %s73
    %s88 = sphi 0, %s74
    %s92 = sphi 0, %s92
    %s94 = sphi 0, %s92
    %s95 = sphi 0, %s94
    %s109 = sphi 0, %s95
    %s113 = sphi 0, %s113
    %s115 = sphi 0, %s113
    %s116 = sphi 0, %s115
    %s130 = sphi 0, %s116
    %s142 = sphi 0, %s144
    %s145 = sphi 0, %s142
    %s146 = sphi 0, %s145
    %s162 = sphi 0, %s146
  $region4: #{cell_forward.1} parent=0 // loop_header_branch
    %13 = sbr.rel (%p11) target = $region8
  $region5: #{cell_forward.1} parent=0 // loop_body
    %s15 = ssub.s32 %s10, 1
    %s16 = ssub.s32 %s10, 2
    %s26 = sadd.s32 1, %s19
    %p27 = scmp.ge.s32.totalorder %s26, 1
    %s28 = scalar_select %p27, 0, %s26
    %s29 = sadd.s32 1, %s18
    %s30 = scalar_select %p27, %s29, %s18
    %p31 = scmp.ge.s32.totalorder %s30, 2
    %s32 = scalar_select %p31, 0, %s30
    %s33 = sadd.s32 1, %s17
    %s34 = scalar_select %p31, %s33, %s17
    %p35 = scmp.ge.s32.totalorder %s34, 2
    %s36 = scalar_select %p35, 0, %s34
    %s37 = ssub.s32 1, %s17
    %s38 = smul.u32 %s18, %s37
    %s39 = smul.u32 %s19, %s37
    %s40 = ssub.s32 1, %s36
    %s41 = smul.u32 %s32, %s40
    %s42 = smul.u32 %s28, %s40
    %s43 = ssub.s32 %s38, %s41
    %s44 = ssub.s32 %s39, %s42
    %s45 = sor.u32 %s43, %s44
    %p46 = scmp.eq.s32.totalorder %s45, 0
    %s48 = sadd.s32 %s47, 1
    %s49 = scalar_select %p46, %s47, %s48
    %p52 = pneg %p46
    %p53 = scmp.eq.s32.totalorder %s10, 3
    %p54 = por %p52, %p53
    %p55 = scmp.ne.s32.totalorder %s47, %s50
    %p56 = scmp.eq.s32.totalorder %s10, 0
    %p57 = por %p55, %p56
    %p58 = scmp.ne.s32.totalorder %s47, %s50
    %p59 = scmp.eq.s32.totalorder %s15, 3
    %p60 = por %p58, %p59
    %p61 = scmp.ne.s32.totalorder %s50, %s51
    %p62 = scmp.eq.s32.totalorder %s15, 0
    %p63 = por %p61, %p62
    %p64 = scmp.ne.s32.totalorder %s50, %s51
    %p65 = scmp.eq.s32.totalorder %s16, 3
    %p66 = por %p64, %p65
    %p68 = scmp.ne.s32.totalorder %s51, %s67
    %p69 = scmp.eq.s32.totalorder %s16, 0
    %p70 = por %p68, %p69
    %s72 = sadd.s32 %s71, 1
    %p75 = scmp.eq.s32.totalorder %s10, 3
    %p76 = scmp.ne.s32.totalorder %s71, %s73
    %p77 = scmp.eq.s32.totalorder %s10, 0
    %p78 = por %p76, %p77
    %p79 = scmp.ne.s32.totalorder %s71, %s73
    %p80 = scmp.eq.s32.totalorder %s15, 3
    %p81 = por %p79, %p80
    %p82 = scmp.ne.s32.totalorder %s73, %s74
    %p83 = scmp.eq.s32.totalorder %s15, 0
    %p84 = por %p82, %p83
    %p85 = scmp.ne.s32.totalorder %s73, %s74
    %p86 = scmp.eq.s32.totalorder %s16, 3
    %p87 = por %p85, %p86
    %p89 = scmp.ne.s32.totalorder %s74, %s88
    %p90 = scmp.eq.s32.totalorder %s16, 0
    %p91 = por %p89, %p90
    %s93 = sadd.s32 %s92, 1
    %p96 = scmp.eq.s32.totalorder %s10, 3
    %p97 = scmp.ne.s32.totalorder %s92, %s94
    %p98 = scmp.eq.s32.totalorder %s10, 0
    %p99 = por %p97, %p98
    %p100 = scmp.ne.s32.totalorder %s92, %s94
    %p101 = scmp.eq.s32.totalorder %s15, 3
    %p102 = por %p100, %p101
    %p103 = scmp.ne.s32.totalorder %s94, %s95
    %p104 = scmp.eq.s32.totalorder %s15, 0
    %p105 = por %p103, %p104
    %p106 = scmp.ne.s32.totalorder %s94, %s95
    %p107 = scmp.eq.s32.totalorder %s16, 3
    %p108 = por %p106, %p107
    %p110 = scmp.ne.s32.totalorder %s95, %s109
    %p111 = scmp.eq.s32.totalorder %s16, 0
    %p112 = por %p110, %p111
    %s114 = sadd.s32 %s113, 1
    %p117 = scmp.eq.s32.totalorder %s10, 3
    %p118 = scmp.ne.s32.totalorder %s113, %s115
    %p119 = scmp.eq.s32.totalorder %s10, 0
    %p120 = por %p118, %p119
    %p121 = scmp.ne.s32.totalorder %s113, %s115
    %p122 = scmp.eq.s32.totalorder %s15, 3
    %p123 = por %p121, %p122
    %p124 = scmp.ne.s32.totalorder %s115, %s116
    %p125 = scmp.eq.s32.totalorder %s15, 0
    %p126 = por %p124, %p125
    %p127 = scmp.ne.s32.totalorder %s115, %s116
    %p128 = scmp.eq.s32.totalorder %s16, 3
    %p129 = por %p127, %p128
    %p131 = scmp.ne.s32.totalorder %s116, %s130
    %p132 = scmp.eq.s32.totalorder %s16, 0
    %p133 = por %p131, %p132
    %s134 = smul.u32 %s18, %s17
    %s135 = smul.u32 %s19, %s17
    %s136 = smul.u32 %s32, %s36
    %s137 = smul.u32 %s28, %s36
    %s138 = ssub.s32 %s134, %s136
    %s139 = ssub.s32 %s135, %s137
    %s140 = sor.u32 %s138, %s139
    %p141 = scmp.eq.s32.totalorder %s140, 0
    %s143 = sadd.s32 %s142, 1
    %s144 = scalar_select %p141, %s142, %s143
    %p147 = pneg %p141
    %p148 = scmp.eq.s32.totalorder %s10, 3
    %p149 = por %p147, %p148
    %p150 = scmp.ne.s32.totalorder %s142, %s145
    %p151 = scmp.eq.s32.totalorder %s10, 0
    %p152 = por %p150, %p151
    %p153 = scmp.ne.s32.totalorder %s142, %s145
    %p154 = scmp.eq.s32.totalorder %s15, 3
    %p155 = por %p153, %p154
    %p156 = scmp.ne.s32.totalorder %s145, %s146
    %p157 = scmp.eq.s32.totalorder %s15, 0
    %p158 = por %p156, %p157
    %p159 = scmp.ne.s32.totalorder %s145, %s146
    %p160 = scmp.eq.s32.totalorder %s16, 3
    %p161 = por %p159, %p160
    %p163 = scmp.ne.s32.totalorder %s146, %s162
    %p164 = scmp.eq.s32.totalorder %s16, 0
    %p165 = por %p163, %p164
    %p166 = scmp.le.s32.totalorder 1, %s10
    %p167 = scmp.lt.s32.totalorder %s10, 5
    %p168 = pnand %p166, %p167
    %p169 = pneg %p168
    // Predicated region
    $region9: #{cell_forward.1} parent=5 // pred_check
      _
    $region10: #{cell_forward.1} parent=5 // pred_check_branch
      %171 = sbr.rel (%p168) target = $region12
    $region11: #{cell_forward.1} parent=5 // pred_region
      %s172 = ssub.s32 %s10, 1
      // Predicated region
      $region13: #{cell_forward.1} parent=11 // pred_check
        %p173 = pneg %p84
      $region14: #{cell_forward.1} parent=11 // pred_check_branch
        %175 = sbr.rel (%p173) target = $region16
      $region15: #{cell_forward.1} parent=11 // pred_region
        _
      $region16: #{cell_forward.1} parent=11 // pred_fallthru
        _
      // Predicated region
      $region17: #{cell_forward.1} parent=11 // pred_check
        %p176 = pneg %p105
      $region18: #{cell_forward.1} parent=11 // pred_check_branch
        %178 = sbr.rel (%p176) target = $region20
      $region19: #{cell_forward.1} parent=11 // pred_region
        _
      $region20: #{cell_forward.1} parent=11 // pred_fallthru
        _
      // Predicated region
      $region21: #{cell_forward.1} parent=11 // pred_check
        %p179 = pneg %p126
      $region22: #{cell_forward.1} parent=11 // pred_check_branch
        %181 = sbr.rel (%p179) target = $region24
      $region23: #{cell_forward.1} parent=11 // pred_region
        _
      $region24: #{cell_forward.1} parent=11 // pred_fallthru
        _
    $region12: #{cell_forward.1} parent=5 // pred_fallthru
      _
    %p182 = scmp.lt.s32.totalorder %s10, 4
    // Predicated region
    $region25: #{cell_forward.1} parent=5 // pred_check
      %p183 = pneg %p182
    $region26: #{cell_forward.1} parent=5 // pred_check_branch
      %185 = sbr.rel (%p183) target = $region28
    $region27: #{cell_forward.1} parent=5 // pred_region
      // Predicated region
      $region29: #{cell_forward.1} parent=27 // pred_check
        %p186 = pneg %p57
      $region30: #{cell_forward.1} parent=27 // pred_check_branch
        %188 = sbr.rel (%p186) target = $region32
      $region31: #{cell_forward.1} parent=27 // pred_region
        %s189 = ssub.s32 1, %s17
        %s190 = smul.u32 %s18, %s189
        %s191 = smul.u32 %s19, %s189
        %s192 = smul.u32 2, %s191
        %p193 = scmp.lt.s32.totalorder %s190, 1
        %s194 = scalar_select %p193, %s190, 1
        %p195 = scmp.lt.s32.totalorder %s192, 1
        %s196 = scalar_select %p195, %s192, 1
        %s197 = smul.addr %s194, 2
        %s198 = sadd.s32 %s196, %s197
        %s199 = smul.addr %s198, 8
        %s200 = scalar_lea.vmem %s0, %s199
        %s201 = ssub.s32 1, %s17
        %s202 = smul.u32 %s18, %s201
        %s203 = smul.u32 %s19, %s201
        %s204 = smul.u32 2, %s203
      $region32: #{cell_forward.1} parent=27 // pred_fallthru
        _
    $region28: #{cell_forward.1} parent=5 // pred_fallthru
      _
    %p205 = scmp.le.s32.totalorder 1, %s10
    %p206 = scmp.lt.s32.totalorder %s10, 5
    %p207 = pnand %p205, %p206
    %p208 = pneg %p207
    // Predicated region
    $region33: #{cell_forward.1} parent=5 // pred_check
      _
    $region34: #{cell_forward.1} parent=5 // pred_check_branch
      %210 = sbr.rel (%p207) target = $region36
    $region35: #{cell_forward.1} parent=5 // pred_region
      %s211 = ssub.s32 %s10, 1
      %s212 = ssub.s32 1, %s20
      %s213 = smul.u32 %s21, %s212
      %s214 = smul.u32 %s22, %s212
      %s215 = smul.u32 2, %s214
      %p216 = scmp.lt.s32.totalorder %s213, 1
      %s217 = scalar_select %p216, %s213, 1
      %p218 = scmp.lt.s32.totalorder %s215, 1
      %s219 = scalar_select %p218, %s215, 1
      %s220 = smul.addr %s217, 2
      %s221 = sadd.s32 %s219, %s220
      %s222 = smul.addr %s221, 8
      %s223 = scalar_lea.vmem %s0, %s222
      %p224 = pneg %p63
      %p225 = pneg %p60
      %p226 = pneg %p84
      %p227 = pneg %p81
      %p228 = pneg %p105
      %p229 = pneg %p102
      %p230 = pneg %p126
      %p231 = pneg %p123
      %p232 = pneg %p158
      %p233 = pneg %p155
      %s234 = smul.u32 %s21, %s20
      %s235 = smul.u32 %s22, %s20
      %s236 = smul.u32 2, %s235
      %p237 = scmp.lt.s32.totalorder %s234, 1
      %s238 = scalar_select %p237, %s234, 1
      %p239 = scmp.lt.s32.totalorder %s236, 1
      %s240 = scalar_select %p239, %s236, 1
      %s241 = smul.addr %s238, 2
      %s242 = sadd.s32 %s240, %s241
      %s243 = smul.addr %s242, 8
      %s244 = scalar_lea.vmem %s4, %s243
      %s245 = ssub.s32 1, %s20
      %s246 = smul.u32 %s21, %s245
      %s247 = smul.u32 %s22, %s245
      %s248 = smul.u32 2, %s247
      %p249 = scmp.lt.s32.totalorder %s246, 1
      %s250 = scalar_select %p249, %s246, 1
      %p251 = scmp.lt.s32.totalorder %s248, 1
      %s252 = scalar_select %p251, %s248, 1
      %s253 = smul.addr %s250, 2
      %s254 = sadd.s32 %s252, %s253
      %s255 = smul.addr %s254, 8
      %s256 = scalar_lea.vmem %s0, %s255
      %s257 = ssub.s32 1, %s20
      %s258 = smul.u32 %s21, %s257
      %s259 = smul.u32 %s22, %s257
      %s260 = smul.u32 2, %s259
      %s261 = smul.u32 %s21, %s20
      %s262 = smul.u32 %s22, %s20
      %s263 = smul.u32 2, %s262
      %p264 = scmp.lt.s32.totalorder %s261, 1
      %s265 = scalar_select %p264, %s261, 1
      %p266 = scmp.lt.s32.totalorder %s263, 1
      %s267 = scalar_select %p266, %s263, 1
      %s268 = smul.addr %s265, 2
      %s269 = sadd.s32 %s267, %s268
      %s270 = smul.addr %s269, 8
      %s271 = scalar_lea.vmem %s4, %s270
      %s272 = smul.u32 %s21, %s20
      %s273 = smul.u32 %s22, %s20
      %s274 = smul.u32 2, %s273
      %p276 = scmp.eq.s32.totalorder %s21, 0
      %p277 = scmp.eq.s32.totalorder %s22, 0
      %p278 = pnand %p276, %p277
      %p279 = pneg %p278
      %p280 = scmp.eq.s32.totalorder %s20, 0
      %p281 = pnand %p280, %p279
      %p282 = pneg %p281
      // Predicated region
      $region37: #{cell_forward.1} parent=35 // pred_check
        _
      $region38: #{cell_forward.1} parent=35 // pred_check_branch
        %284 = sbr.rel (%p281) target = $region40
      $region39: #{cell_forward.1} parent=35 // pred_region
        %285 = vst [vmem:[#allocation2] sm:$0xff] 0.0
        %286 = vst [vmem:[#allocation2 + $0x8] sm:$0xff] 0.0
        %287 = vst [vmem:[#allocation3] sm:$0xff] 0.0
        %288 = vst [vmem:[#allocation3 + $0x8] sm:$0xff] 0.0
      $region40: #{cell_forward.1} parent=35 // pred_fallthru
        _
      // Predicated region
      $region41: #{cell_forward.1} parent=35 // pred_check
        %p289 = pneg %p280
      $region42: #{cell_forward.1} parent=35 // pred_check_branch
        %291 = sbr.rel (%p289) target = $region44
      $region43: #{cell_forward.1} parent=35 // pred_region
        %v292 = vld [vmem:[%s256] sm:$0xff]
        %v293 = vld [vmem:[%s256 + $0x8] sm:$0xff]
        %s294 = sadd.s32 %s21, %s22
        %s295 = smul.u32 %s294, 2
        %s296 = smul.addr %s295, 8
        %s297 = scalar_lea.vmem [#allocation6], %s296
        %298 = vst [vmem:[%s297] sm:$0xff] %v292
        %299 = vst [vmem:[%s297 + $0x8] sm:$0xff] %v293
        %v300 = vld [vmem:[%s1] sm:$0xf]
        %v301 = vpack.c.bf16 %v292, %v292
        %v302 = vpack.c.bf16 %v293, %v293
        %vm303 = vcmask 64512
        %v305 = vsel %vm303, %v300, 0
        %vm307 = vcmask 1043456
        %v309 = vsel %vm307, %v301, 0
        %v312 = vsel %vm307, %v302, 0
        %314 = vmatprep.subr.bf16.mxu0 %v312
        %315 = vmatpush1.bf16.msra.mxu0 %v309
        %316 = vmatprep.subr.bf16.mxu0 0
        %317 = vmatpush1.bf16.msra.mxu0 0
        %318 = vmatprep.subr.bf16.mxu0 0
        %319 = vmatpush1.bf16.msra.mxu0 0
        %320 = vmatprep.subr.bf16.mxu0 0
        %321 = vmatpush1.bf16.msra.mxu0 0
        %322 = vmatprep.subr.bf16.mxu0 0
        %323 = vmatpush1.bf16.msra.mxu0 0
        %324 = vmatprep.subr.bf16.mxu0 0
        %325 = vmatpush1.bf16.msra.mxu0 0
        %326 = vmatprep.subr.bf16.mxu0 0
        %327 = vmatpush1.bf16.msra.mxu0 0
        %328 = vmatprep.subr.bf16.mxu0 0
        %329 = vmatpush1.bf16.msra.mxu0 0
        %330 = vmatprep.subr.bf16.mxu0 0
        %331 = vmatpush1.bf16.msra.mxu0 0
        %332 = vmatprep.subr.bf16.mxu0 0
        %333 = vmatpush1.bf16.msra.mxu0 0
        %334 = vmatprep.subr.bf16.mxu0 0
        %335 = vmatpush1.bf16.msra.mxu0 0
        %336 = vmatprep.subr.bf16.mxu0 0
        %337 = vmatpush1.bf16.msra.mxu0 0
        %338 = vmatprep.subr.bf16.mxu0 0
        %339 = vmatpush1.bf16.msra.mxu0 0
        %340 = vmatprep.subr.bf16.mxu0 0
        %341 = vmatpush1.bf16.msra.mxu0 0
        %342 = vmatprep.subr.bf16.mxu0 0
        %343 = vmatpush1.bf16.msra.mxu0 0
        %344 = vmatprep.subr.bf16.mxu0 0
        %345 = vmatpush1.bf16.msra.mxu0 0
        %346 = vmatprep.mubr.bf16.mxu0 0
        %347 = vmatmul.mubr.bf16.gmra.mrb[0].mxu0 %v305
        %v348 = vpop.f32.mrb[0].mxu0
        %v349 = vadd.f32 0.0, %v348
        %v350 = vpop.f32.mrb[0].mxu0
        %v351 = vadd.f32 0.0, %v350
        %v352 = vpop.f32.mrb[0].mxu0
        %v353 = vpop.f32.mrb[0].mxu0
        %354 = vdwg.mxu0
        %v355 = vld [vmem:[#allocation2] sm:$0xff]
        %v356 = vld [vmem:[#allocation2 + $0x8] sm:$0xff]
        %v357 = vadd.f32 %v355, %v349
        %v358 = vadd.f32 %v356, %v351
        %359 = vst [vmem:[#allocation2] sm:$0xff] %v357
        %360 = vst [vmem:[#allocation2 + $0x8] sm:$0xff] %v358
        %v361 = vld [vmem:[#allocation3] sm:$0xff]
        %v362 = vld [vmem:[#allocation3 + $0x8] sm:$0xff]
        %v363 = vmul.f32 %v349, %v349
        %v364 = vmul.f32 %v351, %v351
        %v365 = vadd.f32 %v361, %v363
        %v366 = vadd.f32 %v362, %v364
        %367 = vst [vmem:[#allocation3] sm:$0xff] %v365
        %368 = vst [vmem:[#allocation3 + $0x8] sm:$0xff] %v366
      $region44: #{cell_forward.1} parent=35 // pred_fallthru
        _
      %p369 = scmp.eq.s32.totalorder %s20, 1
      %p370 = pnand %p369, %p279
      %p371 = pneg %p370
      // Predicated region
      $region45: #{cell_forward.1} parent=35 // pred_check
        _
      $region46: #{cell_forward.1} parent=35 // pred_check_branch
        %373 = sbr.rel (%p370) target = $region48
      $region47: #{cell_forward.1} parent=35 // pred_region
        %v374 = vld [vmem:[#allocation2] sm:$0xff]
        %v375 = vld [vmem:[#allocation2 + $0x8] sm:$0xff]
        %v376 = vadd.f32 %v374, %v375
        %377 = vadd.xlane.f32.xlu0 %v376
        %v378 = vpop.xlane.xlu0 %377
        %v379 = vmul.f32 %v378, 0.001953125
        %v380 = vld [vmem:[#allocation3] sm:$0xff]
        %v381 = vld [vmem:[#allocation3 + $0x8] sm:$0xff]
        %v382 = vadd.f32 %v380, %v381
        %383 = vadd.xlane.f32.xlu0 %v382
        %v384 = vpop.xlane.xlu0 %383
        %v385 = vmul.f32 %v384, 0.001953125
        %v386 = vmul.f32 %v379, %v379
        %v387 = vsub.f32 %v385, %v386
        %v388 = vmax.f32 %v387, 0.0
        %v389 = vadd.f32 %v388, 1e-05
        %v390 = vrsqrt.pop %v389
        %v391 = vld [vmem:[%s2] sm:$0xff]
        %v392 = vmul.f32 %v391, %v390
        %vm393 = vcmask 7168
        %394 = vst.msk [vmem:[#allocation4] sm:$0xff] %vm393, %v392
        %v395 = vld [vmem:[%s3] sm:$0xff]
        %v396 = vmul.f32 %v379, %v392
        %v397 = vsub.f32 %v395, %v396
        %398 = vst.msk [vmem:[#allocation5] sm:$0xff] %vm393, %v397
      $region48: #{cell_forward.1} parent=35 // pred_fallthru
        _
      // Predicated region
      $region49: #{cell_forward.1} parent=35 // pred_check
        %p399 = pneg %p369
      $region50: #{cell_forward.1} parent=35 // pred_check_branch
        %401 = sbr.rel (%p399) target = $region52
      $region51: #{cell_forward.1} parent=35 // pred_region
        %s402 = sadd.s32 %s21, %s22
        %s403 = smul.u32 %s402, 2
        %s404 = smul.addr %s403, 8
        %s405 = scalar_lea.vmem [#allocation6], %s404
        %v406 = vld [vmem:[%s405] sm:$0xff]
        %v407 = vld [vmem:[%s405 + $0x8] sm:$0xff]
        %v408 = vld [vmem:[%s1] sm:$0xf]
        %v409 = vpack.c.bf16 %v406, %v406
        %v410 = vpack.c.bf16 %v407, %v407
        %vm411 = vcmask 64512
        %v413 = vsel %vm411, %v408, 0
        %vm415 = vcmask 1043456
        %v417 = vsel %vm415, %v409, 0
        %v420 = vsel %vm415, %v410, 0
        %422 = vmatprep.subr.bf16.mxu0 %v420
        %423 = vmatpush1.bf16.msra.mxu0 %v417
        %424 = vmatprep.subr.bf16.mxu0 0
        %425 = vmatpush1.bf16.msra.mxu0 0
        %426 = vmatprep.subr.bf16.mxu0 0
        %427 = vmatpush1.bf16.msra.mxu0 0
        %428 = vmatprep.subr.bf16.mxu0 0
        %429 = vmatpush1.bf16.msra.mxu0 0
        %430 = vmatprep.subr.bf16.mxu0 0
        %431 = vmatpush1.bf16.msra.mxu0 0
        %432 = vmatprep.subr.bf16.mxu0 0
        %433 = vmatpush1.bf16.msra.mxu0 0
        %434 = vmatprep.subr.bf16.mxu0 0
        %435 = vmatpush1.bf16.msra.mxu0 0
        %436 = vmatprep.subr.bf16.mxu0 0
        %437 = vmatpush1.bf16.msra.mxu0 0
        %438 = vmatprep.subr.bf16.mxu0 0
        %439 = vmatpush1.bf16.msra.mxu0 0
        %440 = vmatprep.subr.bf16.mxu0 0
        %441 = vmatpush1.bf16.msra.mxu0 0
        %442 = vmatprep.subr.bf16.mxu0 0
        %443 = vmatpush1.bf16.msra.mxu0 0
        %444 = vmatprep.subr.bf16.mxu0 0
        %445 = vmatpush1.bf16.msra.mxu0 0
        %446 = vmatprep.subr.bf16.mxu0 0
        %447 = vmatpush1.bf16.msra.mxu0 0
        %448 = vmatprep.subr.bf16.mxu0 0
        %449 = vmatpush1.bf16.msra.mxu0 0
        %450 = vmatprep.subr.bf16.mxu0 0
        %451 = vmatpush1.bf16.msra.mxu0 0
        %452 = vmatprep.subr.bf16.mxu0 0
        %453 = vmatpush1.bf16.msra.mxu0 0
        %454 = vmatprep.mubr.bf16.mxu0 0
        %455 = vmatmul.mubr.bf16.gmra.mrb[0].mxu0 %v413
        %v456 = vpop.f32.mrb[0].mxu0
        %v457 = vadd.f32 0.0, %v456
        %v458 = vpop.f32.mrb[0].mxu0
        %v459 = vadd.f32 0.0, %v458
        %v460 = vpop.f32.mrb[0].mxu0
        %v461 = vpop.f32.mrb[0].mxu0
        %462 = vdwg.mxu0
        %v463 = vld [vmem:[#allocation4] sm:$0xff]
        %465 = vset.pattern.permute.xlu0 0
        %466 = vperm.xlu0 %465, %v463
        %v467 = vpop.permute.xlu0 %466
        %v469 = vmul.f32 %v457, %v467
        %v470 = vmul.f32 %v459, %v467
        %v471 = vld [vmem:[#allocation5] sm:$0xff]
        %473 = vset.pattern.permute.xlu0 0
        %474 = vperm.xlu0 %473, %v471
        %v475 = vpop.permute.xlu0 %474
        %v477 = vadd.f32 %v469, %v475
        %v478 = vadd.f32 %v470, %v475
        %v479 = vmax.f32 %v477, 0.0
        %v480 = vmax.f32 %v478, 0.0
        %v481 = vadd.f32 %v479, %v406
        %v482 = vadd.f32 %v480, %v407
        %483 = vst [vmem:[%s271] sm:$0xff] %v481
        %484 = vst [vmem:[%s271 + $0x8] sm:$0xff] %v482
      $region52: #{cell_forward.1} parent=35 // pred_fallthru
        _
      %s485 = smul.u32 %s21, %s20
      %s486 = smul.u32 %s22, %s20
      %s487 = smul.u32 2, %s486
      %p488 = scmp.lt.s32.totalorder %s485, 1
      %s489 = scalar_select %p488, %s485, 1
      %p490 = scmp.lt.s32.totalorder %s487, 1
      %s491 = scalar_select %p490, %s487, 1
      %s492 = smul.addr %s489, 2
      %s493 = sadd.s32 %s491, %s492
      %s494 = smul.addr %s493, 8
      %s495 = scalar_lea.vmem %s4, %s494
      // Predicated region
      $region53: #{cell_forward.1} parent=35 // pred_check
        %p496 = pneg %p155
      $region54: #{cell_forward.1} parent=35 // pred_check_branch
        %498 = sbr.rel (%p496) target = $region56
      $region55: #{cell_forward.1} parent=35 // pred_region
        %s499 = smul.u32 %s21, %s20
        %s500 = smul.u32 %s22, %s20
        %s501 = smul.u32 2, %s500
      $region56: #{cell_forward.1} parent=35 // pred_fallthru
        _
    $region36: #{cell_forward.1} parent=5 // pred_fallthru
      _
    %p502 = scmp.le.s32.totalorder 2, %s10
    // Predicated region
    $region57: #{cell_forward.1} parent=5 // pred_check
      %p503 = pneg %p502
    $region58: #{cell_forward.1} parent=5 // pred_check_branch
      %505 = sbr.rel (%p503) target = $region60
    $region59: #{cell_forward.1} parent=5 // pred_region
      %s506 = ssub.s32 %s10, 2
      // Predicated region
      $region61: #{cell_forward.1} parent=59 // pred_check
        %p507 = pneg %p161
      $region62: #{cell_forward.1} parent=59 // pred_check_branch
        %509 = sbr.rel (%p507) target = $region64
      $region63: #{cell_forward.1} parent=59 // pred_region
        %s510 = smul.u32 %s24, %s23
        %s511 = smul.u32 %s25, %s23
        %s512 = smul.u32 2, %s511
        %p513 = scmp.lt.s32.totalorder %s510, 1
        %s514 = scalar_select %p513, %s510, 1
        %p515 = scmp.lt.s32.totalorder %s512, 1
        %s516 = scalar_select %p515, %s512, 1
        %s517 = smul.addr %s514, 2
        %s518 = sadd.s32 %s516, %s517
        %s519 = smul.addr %s518, 8
        %s520 = scalar_lea.vmem %s4, %s519
      $region64: #{cell_forward.1} parent=59 // pred_fallthru
        _
    $region60: #{cell_forward.1} parent=5 // pred_fallthru
      _
  $region6: #{cell_forward.1} parent=0 // loop_footer
    %s14 = sadd.s32 1, %s10
  $region7: #{cell_forward.1} parent=0 // loop_footer_branch
    %9 = sbr.rel target = $region3
  $region8: #{cell_forward.1} parent=0 // loop_exit
    _

</llo_original>
